<compile_context>
chip_gen: v6e
topology: v6e:2x2x1
jax: 0.10.0
libtpu: 0.0.40
codegen_flags: <defaults>
</compile_context>

<pallas_src>
import jax
import jax.numpy as jnp
from jax import lax
from jax.experimental import pallas as pl
from jax.experimental.pallas import tpu as pltpu


def mlp_kernel(x_ref, w1_ref, b1_ref, w2_ref, b2_ref, w3t_ref, b3_ref, o_ref):
    # x_ref:   (tm, 128) packed input (two logical rows per physical row), f32
    # w1_ref:  (128, 128) block-diag layer-1 weight, bf16
    # b1_ref:  (1, 128)   duplicated layer-1 bias, f32
    # w2_ref:  (128, 128) block-diag layer-2 weight, bf16
    # b2_ref:  (1, 128)   duplicated layer-2 bias, f32
    # w3t_ref: (8, 128)   row-padded transposed block-diag layer-3 weight, bf16
    # b3_ref:  (1,)       layer-3 bias, SMEM scalar, f32
    # o_ref:   (8, tm)    lane-dense output block; rows 0/1 are the real outputs
    x = x_ref[...].astype(jnp.bfloat16)

    # layer 1 + ReLU (MXU in bf16, bias/ReLU in f32 on the VPU)
    h = jnp.dot(x, w1_ref[...], preferred_element_type=jnp.float32)
    h = jnp.maximum(h + b1_ref[...], 0.0)

    # layer 2 + ReLU
    h = jnp.dot(h.astype(jnp.bfloat16), w2_ref[...],
                preferred_element_type=jnp.float32)
    h = jnp.maximum(h + b2_ref[...], 0.0)

    # layer 3, contracted on the last dim of both operands ('ok,rk->or') so the
    # result comes out transposed -> lane-dense (8, tm) store.
    o_t = lax.dot_general(
        w3t_ref[...], h.astype(jnp.bfloat16),
        dimension_numbers=(((1,), (1,)), ((), ())),
        preferred_element_type=jnp.float32)
    o_ref[...] = (o_t + b3_ref[0]).astype(o_ref.dtype)


def _block_diag2(w):
    """(64, o) -> (128, 2*o) block-diagonal diag(w, w)."""
    z = jnp.zeros_like(w)
    return jnp.block([[w, z], [z, w]])


def element_wise_mlp(x, w1, b1, w2, b2, w3, b3, *, block_rows=4096):
    """Fused MLP forward.

    x:  (..., 64) float32
    w1, w2: (64, 64), w3: (1, 64)  -- PyTorch layout (out_features, in_features)
    b1, b2: (64,),  b3: (1,)
    returns (..., 1), same dtype as x.
    """
    orig_dtype = x.dtype
    lead = x.shape[:-1]
    assert x.shape[-1] == 64
    x2 = x.reshape(-1, 64)
    n_rows = x2.shape[0]

    # ---- choose the packed tile size (multiple of 128 packed rows) ----------
    half = pl.cdiv(n_rows, 2)                       # packed rows needed
    tm = max(128, (block_rows // 2) // 128 * 128)   # packed rows per grid step
    while tm > 128 and pl.cdiv(half, tm) < 2:       # keep >=2 steps (v7x 2 TCs)
        tm = max(128, (tm // 2) // 128 * 128)
    n_tiles = pl.cdiv(half, tm)
    np_pad = n_tiles * tm                           # padded packed rows
    n_pad = 2 * np_pad                              # padded logical rows

    # ---- pack two logical rows per 128-lane physical row --------------------
    if n_pad != n_rows:
        x2 = jnp.pad(x2, ((0, n_pad - n_rows), (0, 0)))
    xp = x2.reshape(np_pad, 128)

    # ---- block-diagonal / duplicated parameters (tiny, one-time prep) -------
    w1p = _block_diag2(w1.T).astype(jnp.bfloat16)             # (128, 128)
    w2p = _block_diag2(w2.T).astype(jnp.bfloat16)             # (128, 128)
    w3t = jnp.pad(_block_diag2(w3.T).T, ((0, 6), (0, 0)))     # (8, 128), rows 2..7 zero
    w3t = w3t.astype(jnp.bfloat16)
    b1p = jnp.concatenate([b1, b1]).reshape(1, 128).astype(jnp.float32)
    b2p = jnp.concatenate([b2, b2]).reshape(1, 128).astype(jnp.float32)
    b3s = jnp.asarray(b3, jnp.float32).reshape(1)             # SMEM scalar

    full = lambda i: (0, 0)
    out = pl.pallas_call(
        mlp_kernel,
        out_shape=jax.ShapeDtypeStruct((8, np_pad), orig_dtype),
        grid_spec=pltpu.PrefetchScalarGridSpec(
            num_scalar_prefetch=0,
            grid=(n_tiles,),
            in_specs=[
                pl.BlockSpec((tm, 128), lambda i: (i, 0)),          # packed x tile
                pl.BlockSpec((128, 128), full),                     # W1 block-diag
                pl.BlockSpec((1, 128), full),                       # b1 duplicated
                pl.BlockSpec((128, 128), full),                     # W2 block-diag
                pl.BlockSpec((1, 128), full),                       # b2 duplicated
                pl.BlockSpec((8, 128), full),                       # W3^T (padded)
                pl.BlockSpec(memory_space=pltpu.MemorySpace.SMEM),  # b3 scalar
            ],
            out_specs=pl.BlockSpec((8, tm), lambda i: (0, i)),
        ),
        compiler_params=pltpu.CompilerParams(
            dimension_semantics=("parallel",)),
    )(xp, w1p, b1p, w2p, b2p, w3t, b3s)

    # rows 0/1 of `out` hold [y(2r), y(2r+1)] for packed row r -> un-pack.
    y = out[:2].T.reshape(n_pad, 1)[:n_rows]
    return y.reshape(*lead, 1)


def init_params(key):
    """PyTorch nn.Linear default init: U(-1/sqrt(fan_in), 1/sqrt(fan_in))."""
    ks = jax.random.split(key, 6)
    b = 1.0 / jnp.sqrt(64.0)
    w1 = jax.random.uniform(ks[0], (64, 64), jnp.float32, -b, b)
    b1 = jax.random.uniform(ks[1], (64,), jnp.float32, -b, b)
    w2 = jax.random.uniform(ks[2], (64, 64), jnp.float32, -b, b)
    b2 = jax.random.uniform(ks[3], (64,), jnp.float32, -b, b)
    w3 = jax.random.uniform(ks[4], (1, 64), jnp.float32, -b, b)
    b3 = jax.random.uniform(ks[5], (1,), jnp.float32, -b, b)
    return w1, b1, w2, b2, w3, b3


def reference_mlp(x, w1, b1, w2, b2, w3, b3):
    h = jnp.maximum(x @ w1.T + b1, 0.0)
    h = jnp.maximum(h @ w2.T + b2, 0.0)
    return h @ w3.T + b3


def reference_mlp_bf16(x, w1, b1, w2, b2, w3, b3):
    """Same bf16-input / f32-accumulate quantization as the kernel's MXU path."""
    bf, f32 = jnp.bfloat16, jnp.float32
    h = jnp.dot(x.astype(bf), w1.T.astype(bf), preferred_element_type=f32)
    h = jnp.maximum(h + b1, 0.0)
    h = jnp.dot(h.astype(bf), w2.T.astype(bf), preferred_element_type=f32)
    h = jnp.maximum(h + b2, 0.0)
    return jnp.dot(h.astype(bf), w3.T.astype(bf), preferred_element_type=f32) + b3


if __name__ == "__main__":
    key = jax.random.PRNGKey(0)
    kx, kp = jax.random.split(key)

    # Small, deliberately ragged batch (500 rows x 64 features) to exercise the
    # padding path and a >=2-step grid.
    N = 500
    x = jax.random.normal(kx, (N, 64), jnp.float32)
    params = init_params(kp)

    out = jax.block_until_ready(element_wise_mlp(x, *params))
    assert out.shape == (N, 1)

    ref_bf = reference_mlp_bf16(x, *params)   # matches kernel's bf16 MXU path
    ref_32 = reference_mlp(x, *params)        # full-f32 module semantics
    assert jnp.allclose(out, ref_bf, atol=1e-3, rtol=1e-3), \
        float(jnp.max(jnp.abs(out - ref_bf)))
    assert jnp.allclose(out, ref_32, atol=5e-2, rtol=5e-2), \
        float(jnp.max(jnp.abs(out - ref_32)))
    print("KERNEL_OK")
</pallas_src>

<mosaic_0001>
module attributes {stable_mosaic.version = 11 : i64} {
  func.func @mlp_kernel(%arg0: i32, %arg1: memref<128x128xf32, #tpu.memory_space<vmem>>, %arg2: memref<128x128xbf16, #tpu.memory_space<vmem>>, %arg3: memref<1x128xf32, #tpu.memory_space<vmem>>, %arg4: memref<128x128xbf16, #tpu.memory_space<vmem>>, %arg5: memref<1x128xf32, #tpu.memory_space<vmem>>, %arg6: memref<8x128xbf16, #tpu.memory_space<vmem>>, %arg7: memref<1xf32, #tpu.memory_space<smem>>, %arg8: memref<8x128xf32, #tpu.memory_space<vmem>>) attributes {dimension_semantics = [#tpu.dimension_semantics<parallel>], iteration_bounds = array<i64: 2>, scalar_prefetch = 0 : i64, scratch_operands = 0 : i64, tpu.core_type = #tpu.core_type<tc>, window_params = [{transform_indices = @transform_0, window_bounds = array<i64: 128, 128>}, {pipeline_mode = #tpu.pipeline_mode<synchronous>, transform_indices = @transform_1, window_bounds = array<i64: 128, 128>}, {pipeline_mode = #tpu.pipeline_mode<synchronous>, transform_indices = @transform_2, window_bounds = array<i64: 1, 128>}, {pipeline_mode = #tpu.pipeline_mode<synchronous>, transform_indices = @transform_3, window_bounds = array<i64: 128, 128>}, {pipeline_mode = #tpu.pipeline_mode<synchronous>, transform_indices = @transform_4, window_bounds = array<i64: 1, 128>}, {pipeline_mode = #tpu.pipeline_mode<synchronous>, transform_indices = @transform_5, window_bounds = array<i64: 8, 128>}, {transform_indices = @transform_6, window_bounds = array<i64: 1>}, {transform_indices = @transform_7, window_bounds = array<i64: 8, 128>}]} {
    %c0 = arith.constant 0 : index
    %c0_0 = arith.constant 0 : index
    %0 = vector.load %arg1[%c0, %c0_0] : memref<128x128xf32, #tpu.memory_space<vmem>>, vector<128x128xf32>
    %1 = arith.truncf %0 : vector<128x128xf32> to vector<128x128xbf16>
    %c0_1 = arith.constant 0 : index
    %c0_2 = arith.constant 0 : index
    %2 = vector.load %arg2[%c0_1, %c0_2] : memref<128x128xbf16, #tpu.memory_space<vmem>>, vector<128x128xbf16>
    %cst = arith.constant dense<0.000000e+00> : vector<128x128xf32>
    %3 = tpu.matmul %1, %2, %cst {dimension_numbers = #tpu.dot_dimension_numbers<[1], [0], [0], [1], [0, 0, 1, 1], [], []>} : vector<128x128xbf16>, vector<128x128xbf16>, vector<128x128xf32> -> vector<128x128xf32>
    %c0_3 = arith.constant 0 : index
    %c0_4 = arith.constant 0 : index
    %4 = vector.load %arg3[%c0_3, %c0_4] : memref<1x128xf32, #tpu.memory_space<vmem>>, vector<1x128xf32>
    %5 = vector.broadcast %4 : vector<1x128xf32> to vector<128x128xf32>
    %6 = arith.addf %3, %5 : vector<128x128xf32>
    %cst_5 = arith.constant 0.000000e+00 : f32
    %7 = vector.broadcast %cst_5 : f32 to vector<128x128xf32>
    %8 = arith.maximumf %6, %7 : vector<128x128xf32>
    %9 = arith.truncf %8 : vector<128x128xf32> to vector<128x128xbf16>
    %c0_6 = arith.constant 0 : index
    %c0_7 = arith.constant 0 : index
    %10 = vector.load %arg4[%c0_6, %c0_7] : memref<128x128xbf16, #tpu.memory_space<vmem>>, vector<128x128xbf16>
    %cst_8 = arith.constant dense<0.000000e+00> : vector<128x128xf32>
    %11 = tpu.matmul %9, %10, %cst_8 {dimension_numbers = #tpu.dot_dimension_numbers<[1], [0], [0], [1], [0, 0, 1, 1], [], []>} : vector<128x128xbf16>, vector<128x128xbf16>, vector<128x128xf32> -> vector<128x128xf32>
    %c0_9 = arith.constant 0 : index
    %c0_10 = arith.constant 0 : index
    %12 = vector.load %arg5[%c0_9, %c0_10] : memref<1x128xf32, #tpu.memory_space<vmem>>, vector<1x128xf32>
    %13 = vector.broadcast %12 : vector<1x128xf32> to vector<128x128xf32>
    %14 = arith.addf %11, %13 : vector<128x128xf32>
    %cst_11 = arith.constant 0.000000e+00 : f32
    %15 = vector.broadcast %cst_11 : f32 to vector<128x128xf32>
    %16 = arith.maximumf %14, %15 : vector<128x128xf32>
    %c0_12 = arith.constant 0 : index
    %c0_13 = arith.constant 0 : index
    %17 = vector.load %arg6[%c0_12, %c0_13] : memref<8x128xbf16, #tpu.memory_space<vmem>>, vector<8x128xbf16>
    %18 = arith.truncf %16 : vector<128x128xf32> to vector<128x128xbf16>
    %cst_14 = arith.constant dense<0.000000e+00> : vector<8x128xf32>
    %19 = tpu.matmul %17, %18, %cst_14 {dimension_numbers = #tpu.dot_dimension_numbers<[1], [1], [0], [0], [0, 0, 1, 0], [], []>} : vector<8x128xbf16>, vector<128x128xbf16>, vector<8x128xf32> -> vector<8x128xf32>
    %c0_15 = arith.constant 0 : index
    %20 = memref.load %arg7[%c0_15] : memref<1xf32, #tpu.memory_space<smem>>
    %21 = vector.broadcast %20 : f32 to vector<8x128xf32>
    %22 = arith.addf %19, %21 : vector<8x128xf32>
    %c0_16 = arith.constant 0 : index
    %c0_17 = arith.constant 0 : index
    %23 = vector.load %arg8[%c0_16, %c0_17] : memref<8x128xf32, #tpu.memory_space<vmem>>, vector<8x128xf32>
    tpu.vector_store %arg8[%c0_16, %c0_17], %22 {strides = array<i32>} : memref<8x128xf32, #tpu.memory_space<vmem>>, vector<8x128xf32>,
    return
  }
  func.func @transform_0(%arg0: i32) -> (i32, i32) {
    %c0_i32 = arith.constant 0 : i32
    %c0_i32_0 = arith.constant 0 : i32
    return %arg0, %c0_i32 : i32, i32
  }
  func.func @transform_1(%arg0: i32) -> (i32, i32) {
    %c0_i32 = arith.constant 0 : i32
    %c0_i32_0 = arith.constant 0 : i32
    %c0_i32_1 = arith.constant 0 : i32
    return %c0_i32, %c0_i32_0 : i32, i32
  }
  func.func @transform_2(%arg0: i32) -> (i32, i32) {
    %c0_i32 = arith.constant 0 : i32
    %c0_i32_0 = arith.constant 0 : i32
    %c0_i32_1 = arith.constant 0 : i32
    return %c0_i32, %c0_i32_0 : i32, i32
  }
  func.func @transform_3(%arg0: i32) -> (i32, i32) {
    %c0_i32 = arith.constant 0 : i32
    %c0_i32_0 = arith.constant 0 : i32
    %c0_i32_1 = arith.constant 0 : i32
    return %c0_i32, %c0_i32_0 : i32, i32
  }
  func.func @transform_4(%arg0: i32) -> (i32, i32) {
    %c0_i32 = arith.constant 0 : i32
    %c0_i32_0 = arith.constant 0 : i32
    %c0_i32_1 = arith.constant 0 : i32
    return %c0_i32, %c0_i32_0 : i32, i32
  }
  func.func @transform_5(%arg0: i32) -> (i32, i32) {
    %c0_i32 = arith.constant 0 : i32
    %c0_i32_0 = arith.constant 0 : i32
    %c0_i32_1 = arith.constant 0 : i32
    return %c0_i32, %c0_i32_0 : i32, i32
  }
  func.func @transform_6(%arg0: i32) -> i32 {
    %c0_i32 = arith.constant 0 : i32
    %c0_i32_0 = arith.constant 0 : i32
    return %c0_i32 : i32
  }
  func.func @transform_7(%arg0: i32) -> (i32, i32) {
    %c0_i32 = arith.constant 0 : i32
    %c0_i32_0 = arith.constant 0 : i32
    return %c0_i32, %arg0 : i32, i32
  }
}

</mosaic_0001>

<llo_original>
// kernel: tpu_custom_call.1
$region0: #{tpu_custom_call.1}
  #allocation0 [shape = 'u32[]', space=smem, size = 0x4, offset = 0x4, fixed_abs, tag = 'smem constant byte address 0x4 - core index']
  #allocation1 [shape = 'u32[144,128]{1,0:T(1,128)}', space=vmem, size = 0x12000, scoped, tag = 'internal scratch']
  #allocation2 [shape = 'f32[1]{0:T(128)S(6)}', space=smem, size = 0x200, scoped, tag = 'scoped memory for tpu_custom_call.1']
  %s0 = inlined_call_operand.hbm [shape: f32[256,128], index: 0, kind: input, shape index: {}]
  %s1 = inlined_call_operand.hbm [shape: bf16[128,128], index: 1, kind: input, shape index: {}]
  %s2 = inlined_call_operand.vmem [shape: f32[1,128], index: 2, kind: input, shape index: {}]
  %s3 = inlined_call_operand.hbm [shape: bf16[128,128], index: 3, kind: input, shape index: {}]
  %s4 = inlined_call_operand.vmem [shape: f32[1,128], index: 4, kind: input, shape index: {}]
  %s5 = inlined_call_operand.vmem [shape: bf16[8,128], index: 5, kind: input, shape index: {}]
  %s6 = inlined_call_operand.<no memory space> [shape: f32[1], index: 6, kind: input, shape index: {}]
  %s7 = inlined_call_operand.hbm [shape: f32[8,256], index: 7, kind: output, shape index: {}]
  %s8 = sld [smem:[#allocation0]]
  $region73: #{tpu_custom_call.1} parent=0
    _
  %s10 = ssub.s32 1, %s8
  %s11 = scalar_select 0, %s10, %s8
  %12 = sst [smem:[#allocation2]] %s6
  $region1: #{tpu_custom_call.1} parent=0
    #allocation3 [shape = 'u8[131072]{0}', space=vmem, size = 0x20000, scoped, tag = 'input window, operand 0']
    #allocation4 [shape = 's32[2]{0}', space=sflag, size = 0x8, scoped, tag = 'scoped memory for tpu_custom_call.1']
    #allocation5 [shape = 's32[2]{0}', space=sflag, size = 0x8, scoped, tag = 'scoped memory for tpu_custom_call.1']
    #allocation6 [shape = 'u8[32768]{0}', space=vmem, size = 0x8000, scoped, tag = 'input window, operand 1, single buffered']
    #allocation7 [shape = 's32[1]{0}', space=sflag, size = 0x4, scoped, tag = 'scoped memory for tpu_custom_call.1']
    #allocation8 [shape = 'u8[32768]{0}', space=vmem, size = 0x8000, scoped, tag = 'input window, operand 3, single buffered']
    #allocation9 [shape = 'u8[8192]{0}', space=vmem, size = 0x2000, scoped, tag = 'output window, operand 0']
    %13 = vsyncpa [#allocation4], 0
    %s14 = scalar_lea.sflag [#allocation4], 1
    %15 = vsyncpa %s14, 0
    %16 = vsyncpa [#allocation7], 0
    %17 = vsyncpa [#allocation5], 0
    %s18 = scalar_lea.sflag [#allocation5], 1
    %19 = vsyncpa %s18, 0
    loop: start=0, step=1, limit=4
    $region2: #{tpu_custom_call.1} parent=1 // loop_pre_header
      _
    $region3: #{tpu_custom_call.1} parent=1 // loop_header
      %s21 = sphi 0, %s25
      %p22 = scmp.ge.s32.totalorder %s21, 4
      %s31 = sphi 0, %s33
      %s34 = sphi 0, %s31
      %s35 = sphi 0, %s34
      %s51 = sphi 0, %s35
      %s55 = sphi 0, %s55
      %s57 = sphi 0, %s55
      %s58 = sphi 0, %s57
      %s72 = sphi 0, %s58
      %s76 = sphi 0, %s76
      %s78 = sphi 0, %s76
      %s79 = sphi 0, %s78
      %s93 = sphi 0, %s79
      %s97 = sphi 0, %s97
      %s99 = sphi 0, %s97
      %s100 = sphi 0, %s99
      %s114 = sphi 0, %s100
      %s118 = sphi 0, %s118
      %s120 = sphi 0, %s118
      %s121 = sphi 0, %s120
      %s135 = sphi 0, %s121
      %s139 = sphi 0, %s139
      %s141 = sphi 0, %s139
      %s142 = sphi 0, %s141
      %s156 = sphi 0, %s142
      %s160 = sphi 0, %s160
      %s162 = sphi 0, %s160
      %s163 = sphi 0, %s162
      %s177 = sphi 0, %s163
      %s183 = sphi 0, %s185
      %s186 = sphi 0, %s183
      %s187 = sphi 0, %s186
      %s203 = sphi 0, %s187
    $region4: #{tpu_custom_call.1} parent=1 // loop_header_branch
      %24 = sbr.rel (%p22) target = $region8
    $region5: #{tpu_custom_call.1} parent=1 // loop_body
      %s26 = ssub.s32 %s21, 1
      %s27 = ssub.s32 %s21, 2
      %s28 = sadd.s32 %s21, 1
      %s29 = ssub.s32 %s21, %s28
      %p30 = scmp.eq.s32.totalorder %s29, 0
      %s32 = sadd.s32 %s31, 1
      %s33 = scalar_select %p30, %s31, %s32
      %p36 = pneg %p30
      %p37 = scmp.eq.s32.totalorder %s21, 1
      %p38 = por %p36, %p37
      %p39 = scmp.ne.s32.totalorder %s31, %s34
      %p40 = scmp.eq.s32.totalorder %s21, 0
      %p41 = por %p39, %p40
      %p42 = scmp.ne.s32.totalorder %s31, %s34
      %p43 = scmp.eq.s32.totalorder %s26, 1
      %p44 = por %p42, %p43
      %p45 = scmp.ne.s32.totalorder %s34, %s35
      %p46 = scmp.eq.s32.totalorder %s26, 0
      %p47 = por %p45, %p46
      %p48 = scmp.ne.s32.totalorder %s34, %s35
      %p49 = scmp.eq.s32.totalorder %s27, 1
      %p50 = por %p48, %p49
      %p52 = scmp.ne.s32.totalorder %s35, %s51
      %p53 = scmp.eq.s32.totalorder %s27, 0
      %p54 = por %p52, %p53
      %s56 = sadd.s32 %s55, 1
      %p59 = scmp.eq.s32.totalorder %s21, 1
      %p60 = scmp.ne.s32.totalorder %s55, %s57
      %p61 = scmp.eq.s32.totalorder %s21, 0
      %p62 = por %p60, %p61
      %p63 = scmp.ne.s32.totalorder %s55, %s57
      %p64 = scmp.eq.s32.totalorder %s26, 1
      %p65 = por %p63, %p64
      %p66 = scmp.ne.s32.totalorder %s57, %s58
      %p67 = scmp.eq.s32.totalorder %s26, 0
      %p68 = por %p66, %p67
      %p69 = scmp.ne.s32.totalorder %s57, %s58
      %p70 = scmp.eq.s32.totalorder %s27, 1
      %p71 = por %p69, %p70
      %p73 = scmp.ne.s32.totalorder %s58, %s72
      %p74 = scmp.eq.s32.totalorder %s27, 0
      %p75 = por %p73, %p74
      %s77 = sadd.s32 %s76, 1
      %p80 = scmp.eq.s32.totalorder %s21, 1
      %p81 = scmp.ne.s32.totalorder %s76, %s78
      %p82 = scmp.eq.s32.totalorder %s21, 0
      %p83 = por %p81, %p82
      %p84 = scmp.ne.s32.totalorder %s76, %s78
      %p85 = scmp.eq.s32.totalorder %s26, 1
      %p86 = por %p84, %p85
      %p87 = scmp.ne.s32.totalorder %s78, %s79
      %p88 = scmp.eq.s32.totalorder %s26, 0
      %p89 = por %p87, %p88
      %p90 = scmp.ne.s32.totalorder %s78, %s79
      %p91 = scmp.eq.s32.totalorder %s27, 1
      %p92 = por %p90, %p91
      %p94 = scmp.ne.s32.totalorder %s79, %s93
      %p95 = scmp.eq.s32.totalorder %s27, 0
      %p96 = por %p94, %p95
      %s98 = sadd.s32 %s97, 1
      %p101 = scmp.eq.s32.totalorder %s21, 1
      %p102 = scmp.ne.s32.totalorder %s97, %s99
      %p103 = scmp.eq.s32.totalorder %s21, 0
      %p104 = por %p102, %p103
      %p105 = scmp.ne.s32.totalorder %s97, %s99
      %p106 = scmp.eq.s32.totalorder %s26, 1
      %p107 = por %p105, %p106
      %p108 = scmp.ne.s32.totalorder %s99, %s100
      %p109 = scmp.eq.s32.totalorder %s26, 0
      %p110 = por %p108, %p109
      %p111 = scmp.ne.s32.totalorder %s99, %s100
      %p112 = scmp.eq.s32.totalorder %s27, 1
      %p113 = por %p111, %p112
      %p115 = scmp.ne.s32.totalorder %s100, %s114
      %p116 = scmp.eq.s32.totalorder %s27, 0
      %p117 = por %p115, %p116
      %s119 = sadd.s32 %s118, 1
      %p122 = scmp.eq.s32.totalorder %s21, 1
      %p123 = scmp.ne.s32.totalorder %s118, %s120
      %p124 = scmp.eq.s32.totalorder %s21, 0
      %p125 = por %p123, %p124
      %p126 = scmp.ne.s32.totalorder %s118, %s120
      %p127 = scmp.eq.s32.totalorder %s26, 1
      %p128 = por %p126, %p127
      %p129 = scmp.ne.s32.totalorder %s120, %s121
      %p130 = scmp.eq.s32.totalorder %s26, 0
      %p131 = por %p129, %p130
      %p132 = scmp.ne.s32.totalorder %s120, %s121
      %p133 = scmp.eq.s32.totalorder %s27, 1
      %p134 = por %p132, %p133
      %p136 = scmp.ne.s32.totalorder %s121, %s135
      %p137 = scmp.eq.s32.totalorder %s27, 0
      %p138 = por %p136, %p137
      %s140 = sadd.s32 %s139, 1
      %p143 = scmp.eq.s32.totalorder %s21, 1
      %p144 = scmp.ne.s32.totalorder %s139, %s141
      %p145 = scmp.eq.s32.totalorder %s21, 0
      %p146 = por %p144, %p145
      %p147 = scmp.ne.s32.totalorder %s139, %s141
      %p148 = scmp.eq.s32.totalorder %s26, 1
      %p149 = por %p147, %p148
      %p150 = scmp.ne.s32.totalorder %s141, %s142
      %p151 = scmp.eq.s32.totalorder %s26, 0
      %p152 = por %p150, %p151
      %p153 = scmp.ne.s32.totalorder %s141, %s142
      %p154 = scmp.eq.s32.totalorder %s27, 1
      %p155 = por %p153, %p154
      %p157 = scmp.ne.s32.totalorder %s142, %s156
      %p158 = scmp.eq.s32.totalorder %s27, 0
      %p159 = por %p157, %p158
      %s161 = sadd.s32 %s160, 1
      %p164 = scmp.eq.s32.totalorder %s21, 1
      %p165 = scmp.ne.s32.totalorder %s160, %s162
      %p166 = scmp.eq.s32.totalorder %s21, 0
      %p167 = por %p165, %p166
      %p168 = scmp.ne.s32.totalorder %s160, %s162
      %p169 = scmp.eq.s32.totalorder %s26, 1
      %p170 = por %p168, %p169
      %p171 = scmp.ne.s32.totalorder %s162, %s163
      %p172 = scmp.eq.s32.totalorder %s26, 0
      %p173 = por %p171, %p172
      %p174 = scmp.ne.s32.totalorder %s162, %s163
      %p175 = scmp.eq.s32.totalorder %s27, 1
      %p176 = por %p174, %p175
      %p178 = scmp.ne.s32.totalorder %s163, %s177
      %p179 = scmp.eq.s32.totalorder %s27, 0
      %p180 = por %p178, %p179
      %s181 = ssub.s32 %s21, %s28
      %p182 = scmp.eq.s32.totalorder %s181, 0
      %s184 = sadd.s32 %s183, 1
      %s185 = scalar_select %p182, %s183, %s184
      %p188 = pneg %p182
      %p189 = scmp.eq.s32.totalorder %s21, 1
      %p190 = por %p188, %p189
      %p191 = scmp.ne.s32.totalorder %s183, %s186
      %p192 = scmp.eq.s32.totalorder %s21, 0
      %p193 = por %p191, %p192
      %p194 = scmp.ne.s32.totalorder %s183, %s186
      %p195 = scmp.eq.s32.totalorder %s26, 1
      %p196 = por %p194, %p195
      %p197 = scmp.ne.s32.totalorder %s186, %s187
      %p198 = scmp.eq.s32.totalorder %s26, 0
      %p199 = por %p197, %p198
      %p200 = scmp.ne.s32.totalorder %s186, %s187
      %p201 = scmp.eq.s32.totalorder %s27, 1
      %p202 = por %p200, %p201
      %p204 = scmp.ne.s32.totalorder %s187, %s203
      %p205 = scmp.eq.s32.totalorder %s27, 0
      %p206 = por %p204, %p205
      %p207 = scmp.le.s32.totalorder 1, %s21
      %p208 = scmp.lt.s32.totalorder %s21, 3
      %p209 = pnand %p207, %p208
      %p210 = pneg %p209
      // Predicated region
      $region9: #{tpu_custom_call.1} parent=5 // pred_check
        _
      $region10: #{tpu_custom_call.1} parent=5 // pred_check_branch
        %212 = sbr.rel (%p209) target = $region12
      $region11: #{tpu_custom_call.1} parent=5 // pred_region
        %s213 = ssub.s32 %s21, 1
        // Predicated region
        $region13: #{tpu_custom_call.1} parent=11 // pred_check
          %p214 = pneg %p68
        $region14: #{tpu_custom_call.1} parent=11 // pred_check_branch
          %216 = sbr.rel (%p214) target = $region16
        $region15: #{tpu_custom_call.1} parent=11 // pred_region
          %s218 = ssub.s32 1024, 1024
          %219 = vsyncadd [#allocation7], %s218
          %s220 = sshll.u32 [#allocation6], 4
          %s221 = int_to_ptr.vmem [resolvable:$true] %s220
          %226 = dma.hbm_to_vmem [thread:$0]  %s1, 1024, %s221, [#allocation7], 64, 64, 4
        $region16: #{tpu_custom_call.1} parent=11 // pred_fallthru
          _
        // Predicated region
        $region17: #{tpu_custom_call.1} parent=11 // pred_check
          %p227 = pneg %p89
        $region18: #{tpu_custom_call.1} parent=11 // pred_check_branch
          %229 = sbr.rel (%p227) target = $region20
        $region19: #{tpu_custom_call.1} parent=11 // pred_region
          _
        $region20: #{tpu_custom_call.1} parent=11 // pred_fallthru
          _
        // Predicated region
        $region21: #{tpu_custom_call.1} parent=11 // pred_check
          %p230 = pneg %p110
        $region22: #{tpu_custom_call.1} parent=11 // pred_check_branch
          %232 = sbr.rel (%p230) target = $region24
        $region23: #{tpu_custom_call.1} parent=11 // pred_region
          %s234 = ssub.s32 1024, 1024
          %235 = vsyncadd [#allocation7], %s234
          %s236 = sshll.u32 [#allocation8], 4
          %s237 = int_to_ptr.vmem [resolvable:$true] %s236
          %242 = dma.hbm_to_vmem [thread:$0]  %s3, 1024, %s237, [#allocation7], 64, 64, 4
        $region24: #{tpu_custom_call.1} parent=11 // pred_fallthru
          _
        // Predicated region
        $region25: #{tpu_custom_call.1} parent=11 // pred_check
          %p243 = pneg %p131
        $region26: #{tpu_custom_call.1} parent=11 // pred_check_branch
          %245 = sbr.rel (%p243) target = $region28
        $region27: #{tpu_custom_call.1} parent=11 // pred_region
          _
        $region28: #{tpu_custom_call.1} parent=11 // pred_fallthru
          _
        // Predicated region
        $region29: #{tpu_custom_call.1} parent=11 // pred_check
          %p246 = pneg %p152
        $region30: #{tpu_custom_call.1} parent=11 // pred_check_branch
          %248 = sbr.rel (%p246) target = $region32
        $region31: #{tpu_custom_call.1} parent=11 // pred_region
          _
        $region32: #{tpu_custom_call.1} parent=11 // pred_fallthru
          _
        // Predicated region
        $region33: #{tpu_custom_call.1} parent=11 // pred_check
          %p249 = pneg %p173
        $region34: #{tpu_custom_call.1} parent=11 // pred_check_branch
          %251 = sbr.rel (%p249) target = $region36
        $region35: #{tpu_custom_call.1} parent=11 // pred_region
          _
        $region36: #{tpu_custom_call.1} parent=11 // pred_fallthru
          _
      $region12: #{tpu_custom_call.1} parent=5 // pred_fallthru
        _
      %p252 = scmp.lt.s32.totalorder %s21, 2
      // Predicated region
      $region37: #{tpu_custom_call.1} parent=5 // pred_check
        %p253 = pneg %p252
      $region38: #{tpu_custom_call.1} parent=5 // pred_check_branch
        %255 = sbr.rel (%p253) target = $region40
      $region39: #{tpu_custom_call.1} parent=5 // pred_region
        // Predicated region
        $region41: #{tpu_custom_call.1} parent=39 // pred_check
          %p256 = pneg %p41
        $region42: #{tpu_custom_call.1} parent=39 // pred_check_branch
          %258 = sbr.rel (%p256) target = $region44
        $region43: #{tpu_custom_call.1} parent=39 // pred_region
          %s259 = sand.u32 %s31, 1
          %s260 = scalar_lea.sflag [#allocation4], %s259
          %s261 = sand.u32 %s31, 1
          %s262 = smul.addr %s261, 128
          %s263 = scalar_lea.vmem [#allocation3], %s262
          %s264 = smul.u32 16, %s21
          %s266 = ssub.s32 2048, 2048
          %267 = vsyncadd %s260, %s266
          %s268 = smul.addr %s264, 128
          %s269 = scalar_lea.hbm %s0, %s268
          %s270 = sshll.u32 %s263, 4
          %s271 = int_to_ptr.vmem [resolvable:$true] %s270
          %276 = dma.hbm_to_vmem [thread:$0]  %s269, 2048, %s271, %s260, 128, 128, 8
        $region44: #{tpu_custom_call.1} parent=39 // pred_fallthru
          _
      $region40: #{tpu_custom_call.1} parent=5 // pred_fallthru
        _
      %p277 = scmp.le.s32.totalorder 1, %s21
      %p278 = scmp.lt.s32.totalorder %s21, 3
      %p279 = pnand %p277, %p278
      %p280 = pneg %p279
      // Predicated region
      $region45: #{tpu_custom_call.1} parent=5 // pred_check
        _
      $region46: #{tpu_custom_call.1} parent=5 // pred_check_branch
        %282 = sbr.rel (%p279) target = $region48
      $region47: #{tpu_custom_call.1} parent=5 // pred_region
        %s283 = ssub.s32 %s21, 1
        %s284 = sand.u32 %s34, 1
        %s285 = scalar_lea.sflag [#allocation4], %s284
        %s286 = sand.u32 %s34, 1
        %s287 = smul.addr %s286, 128
        %s288 = scalar_lea.vmem [#allocation3], %s287
        // Predicated region
        $region49: #{tpu_custom_call.1} parent=47 // pred_check
          %p289 = pneg %p47
        $region50: #{tpu_custom_call.1} parent=47 // pred_check_branch
          %291 = sbr.rel (%p289) target = $region52
        $region51: #{tpu_custom_call.1} parent=47 // pred_region
          %292 = dma.done %s285, 2048
        $region52: #{tpu_custom_call.1} parent=47 // pred_fallthru
          _
        // Predicated region
        $region53: #{tpu_custom_call.1} parent=47 // pred_check
          %p293 = pneg %p68
        $region54: #{tpu_custom_call.1} parent=47 // pred_check_branch
          %295 = sbr.rel (%p293) target = $region56
        $region55: #{tpu_custom_call.1} parent=47 // pred_region
          %296 = dma.done [#allocation7], 1024
        $region56: #{tpu_custom_call.1} parent=47 // pred_fallthru
          _
        // Predicated region
        $region57: #{tpu_custom_call.1} parent=47 // pred_check
          %p297 = pneg %p110
        $region58: #{tpu_custom_call.1} parent=47 // pred_check_branch
          %299 = sbr.rel (%p297) target = $region60
        $region59: #{tpu_custom_call.1} parent=47 // pred_region
          %300 = dma.done [#allocation7], 1024
        $region60: #{tpu_custom_call.1} parent=47 // pred_fallthru
          _
        %s301 = sand.u32 %s34, 1
        %s302 = scalar_lea.sflag [#allocation4], %s301
        %s303 = sand.u32 %s34, 1
        %s304 = smul.addr %s303, 128
        %s305 = scalar_lea.vmem [#allocation3], %s304
        %p306 = pneg %p47
        %p307 = pneg %p44
        %p308 = pneg %p68
        %p309 = pneg %p65
        %p310 = pneg %p89
        %p311 = pneg %p86
        %p312 = pneg %p110
        %p313 = pneg %p107
        %p314 = pneg %p131
        %p315 = pneg %p128
        %p316 = pneg %p152
        %p317 = pneg %p149
        %p318 = pneg %p173
        %p319 = pneg %p170
        %p320 = pneg %p199
        %p321 = pneg %p196
        %s322 = sand.u32 %s186, 1
        %s323 = scalar_lea.sflag [#allocation5], %s322
        %s324 = sand.u32 %s186, 1
        %s325 = smul.addr %s324, 8
        %s326 = scalar_lea.vmem [#allocation9], %s325
        %s327 = smul.u32 16, %s26
        %v329 = vld [vmem:[%s288] sm:$0xff]
        %v330 = vld [vmem:[%s288 + $0x8] sm:$0xff]
        %v331 = vld [vmem:[%s288 + $0x10] sm:$0xff]
        %v332 = vld [vmem:[%s288 + $0x18] sm:$0xff]
        %v333 = vld [vmem:[%s288 + $0x20] sm:$0xff]
        %v334 = vld [vmem:[%s288 + $0x28] sm:$0xff]
        %v335 = vld [vmem:[%s288 + $0x30] sm:$0xff]
        %v336 = vld [vmem:[%s288 + $0x38] sm:$0xff]
        %v337 = vld [vmem:[%s288 + $0x40] sm:$0xff]
        %v338 = vld [vmem:[%s288 + $0x48] sm:$0xff]
        %v339 = vld [vmem:[%s288 + $0x50] sm:$0xff]
        %v340 = vld [vmem:[%s288 + $0x58] sm:$0xff]
        %v341 = vld [vmem:[%s288 + $0x60] sm:$0xff]
        %v342 = vld [vmem:[%s288 + $0x68] sm:$0xff]
        %v343 = vld [vmem:[%s288 + $0x70] sm:$0xff]
        %v344 = vld [vmem:[%s288 + $0x78] sm:$0xff]
        %v345 = vpack.c.bf16 %v330, %v329
        %v346 = vpack.c.bf16 %v332, %v331
        %v347 = vpack.c.bf16 %v334, %v333
        %v348 = vpack.c.bf16 %v336, %v335
        %v349 = vpack.c.bf16 %v338, %v337
        %v350 = vpack.c.bf16 %v340, %v339
        %v351 = vpack.c.bf16 %v342, %v341
        %v352 = vpack.c.bf16 %v344, %v343
        %v353 = vld [vmem:[#allocation6] sm:$0xf]
        %v354 = vld [vmem:[#allocation6 + $0x4] sm:$0xf]
        %v355 = vld [vmem:[#allocation6 + $0x8] sm:$0xf]
        %v356 = vld [vmem:[#allocation6 + $0xc] sm:$0xf]
        %v357 = vld [vmem:[#allocation6 + $0x10] sm:$0xf]
        %v358 = vld [vmem:[#allocation6 + $0x14] sm:$0xf]
        %v359 = vld [vmem:[#allocation6 + $0x18] sm:$0xf]
        %v360 = vld [vmem:[#allocation6 + $0x1c] sm:$0xf]
        %v361 = vld [vmem:[#allocation6 + $0x20] sm:$0xf]
        %v362 = vld [vmem:[#allocation6 + $0x24] sm:$0xf]
        %v363 = vld [vmem:[#allocation6 + $0x28] sm:$0xf]
        %v364 = vld [vmem:[#allocation6 + $0x2c] sm:$0xf]
        %v365 = vld [vmem:[#allocation6 + $0x30] sm:$0xf]
        %v366 = vld [vmem:[#allocation6 + $0x34] sm:$0xf]
        %v367 = vld [vmem:[#allocation6 + $0x38] sm:$0xf]
        %v368 = vld [vmem:[#allocation6 + $0x3c] sm:$0xf]
        %v369 = vld [vmem:[%s2] sm:$0x1]
        %v371 = vlaneseq
        %v372 = vshrl.u32 %v371, 7
        %v373 = vsub.s32 0, %v372
        %v374 = vrot.slane %v369, %v373
        %v392 = vunpack.c.l.b16 %v353
        %v393 = vunpack.c.l.b16 %v354
        %v394 = vunpack.c.l.b16 %v355
        %v395 = vunpack.c.l.b16 %v356
        %v396 = vunpack.c.l.b16 %v357
        %v397 = vunpack.c.l.b16 %v358
        %v398 = vunpack.c.l.b16 %v359
        %v399 = vunpack.c.l.b16 %v360
        %v400 = vunpack.c.l.b16 %v361
        %v401 = vunpack.c.l.b16 %v362
        %v402 = vunpack.c.l.b16 %v363
        %v403 = vunpack.c.l.b16 %v364
        %v404 = vunpack.c.l.b16 %v365
        %v405 = vunpack.c.l.b16 %v366
        %v406 = vunpack.c.l.b16 %v367
        %v407 = vunpack.c.l.b16 %v368
        %v408 = vpack.c.b16 %v393, %v392
        %v409 = vpack.c.b16 %v395, %v394
        %v410 = vpack.c.b16 %v397, %v396
        %v411 = vpack.c.b16 %v399, %v398
        %v412 = vpack.c.b16 %v401, %v400
        %v413 = vpack.c.b16 %v403, %v402
        %v414 = vpack.c.b16 %v405, %v404
        %v415 = vpack.c.b16 %v407, %v406
        %424 = vmatprep.subr.bf16.mxu0 0
        %425 = vmatpush1.bf16.msra.mxu0 %v415
        %426 = vmatprep.subr.bf16.mxu0 0
        %427 = vmatpush1.bf16.msra.mxu0 %v414
        %428 = vmatprep.subr.bf16.mxu0 0
        %429 = vmatpush1.bf16.msra.mxu0 %v413
        %430 = vmatprep.subr.bf16.mxu0 0
        %431 = vmatpush1.bf16.msra.mxu0 %v412
        %432 = vmatprep.subr.bf16.mxu0 0
        %433 = vmatpush1.bf16.msra.mxu0 %v411
        %434 = vmatprep.subr.bf16.mxu0 0
        %435 = vmatpush1.bf16.msra.mxu0 %v410
        %436 = vmatprep.subr.bf16.mxu0 0
        %437 = vmatpush1.bf16.msra.mxu0 %v409
        %438 = vmatprep.subr.bf16.mxu0 0
        %439 = vmatpush1.bf16.msra.mxu0 %v408
        %440 = vmatprep.subr.bf16.mxu0 0
        %441 = vmatpush2.bf16.msra.mxu0 0
        %442 = vmatprep.subr.bf16.mxu0 0
        %443 = vmatpush2.bf16.msra.mxu0 0
        %444 = vmatprep.subr.bf16.mxu0 0
        %445 = vmatpush2.bf16.msra.mxu0 0
        %446 = vmatprep.subr.bf16.mxu0 0
        %447 = vmatpush2.bf16.msra.mxu0 0
        %448 = vmatprep.subr.bf16.mxu0 0
        %449 = vmatpush2.bf16.msra.mxu0 0
        %450 = vmatprep.subr.bf16.mxu0 0
        %451 = vmatpush2.bf16.msra.mxu0 0
        %452 = vmatprep.subr.bf16.mxu0 0
        %453 = vmatpush2.bf16.msra.mxu0 0
        %454 = vmatprep.subr.bf16.mxu0 0
        %455 = vmatpush2.bf16.msra.mxu0 0
        %456 = vmatprep.mubr.bf16.mxu0 0
        %457 = vmatmul.mubr.bf16.gmra.mxu0 %v345
        %v458 = vpop.f32.mrf.mxu0
        %v459 = vadd.f32 %v374, %v458
        %v460 = vpop.f32.mrf.mxu0
        %v461 = vpop.f32.mrf.mxu0
        %v462 = vadd.f32 %v374, %v461
        %v463 = vpop.f32.mrf.mxu0
        %464 = vmatprep.mubr.bf16.mxu0 0
        %465 = vmatmul.mubr.bf16.gmra.mxu0 %v346
        %v466 = vpop.f32.mrf.mxu0
        %v467 = vadd.f32 %v374, %v466
        %v468 = vpop.f32.mrf.mxu0
        %v469 = vpop.f32.mrf.mxu0
        %v470 = vadd.f32 %v374, %v469
        %v471 = vpop.f32.mrf.mxu0
        %472 = vmatprep.mubr.bf16.mxu0 0
        %473 = vmatmul.mubr.bf16.gmra.mxu0 %v347
        %v474 = vpop.f32.mrf.mxu0
        %v475 = vadd.f32 %v374, %v474
        %v476 = vpop.f32.mrf.mxu0
        %v477 = vpop.f32.mrf.mxu0
        %v478 = vadd.f32 %v374, %v477
        %v479 = vpop.f32.mrf.mxu0
        %480 = vmatprep.mubr.bf16.mxu0 0
        %481 = vmatmul.mubr.bf16.gmra.mxu0 %v348
        %v482 = vpop.f32.mrf.mxu0
        %v483 = vadd.f32 %v374, %v482
        %v484 = vpop.f32.mrf.mxu0
        %v485 = vpop.f32.mrf.mxu0
        %v486 = vadd.f32 %v374, %v485
        %v487 = vpop.f32.mrf.mxu0
        %488 = vmatprep.mubr.bf16.mxu0 0
        %489 = vmatmul.mubr.bf16.gmra.mxu0 %v349
        %v490 = vpop.f32.mrf.mxu0
        %v491 = vadd.f32 %v374, %v490
        %v492 = vpop.f32.mrf.mxu0
        %v493 = vpop.f32.mrf.mxu0
        %v494 = vadd.f32 %v374, %v493
        %v495 = vpop.f32.mrf.mxu0
        %496 = vmatprep.mubr.bf16.mxu0 0
        %497 = vmatmul.mubr.bf16.gmra.mxu0 %v350
        %v498 = vpop.f32.mrf.mxu0
        %v499 = vadd.f32 %v374, %v498
        %v500 = vpop.f32.mrf.mxu0
        %v501 = vpop.f32.mrf.mxu0
        %v502 = vadd.f32 %v374, %v501
        %v503 = vpop.f32.mrf.mxu0
        %504 = vmatprep.mubr.bf16.mxu0 0
        %505 = vmatmul.mubr.bf16.gmra.mxu0 %v351
        %v506 = vpop.f32.mrf.mxu0
        %v507 = vadd.f32 %v374, %v506
        %v508 = vpop.f32.mrf.mxu0
        %v509 = vpop.f32.mrf.mxu0
        %v510 = vadd.f32 %v374, %v509
        %v511 = vpop.f32.mrf.mxu0
        %512 = vmatprep.mubr.bf16.mxu0 0
        %513 = vmatmul.mubr.bf16.gmra.mxu0 %v352
        %v514 = vpop.f32.mrf.mxu0
        %v515 = vadd.f32 %v374, %v514
        %v516 = vpop.f32.mrf.mxu0
        %v517 = vpop.f32.mrf.mxu0
        %v518 = vadd.f32 %v374, %v517
        %v519 = vpop.f32.mrf.mxu0
        %520 = vdwg.mxu0
        %v521 = vmax.f32 %v459, 0.0
        %v522 = vmax.f32 %v462, 0.0
        %v523 = vmax.f32 %v467, 0.0
        %v524 = vmax.f32 %v470, 0.0
        %v525 = vmax.f32 %v475, 0.0
        %v526 = vmax.f32 %v478, 0.0
        %v527 = vmax.f32 %v483, 0.0
        %v528 = vmax.f32 %v486, 0.0
        %v529 = vmax.f32 %v491, 0.0
        %v530 = vmax.f32 %v494, 0.0
        %v531 = vmax.f32 %v499, 0.0
        %v532 = vmax.f32 %v502, 0.0
        %v533 = vmax.f32 %v507, 0.0
        %v534 = vmax.f32 %v510, 0.0
        %v535 = vmax.f32 %v515, 0.0
        %v536 = vmax.f32 %v518, 0.0
        %v537 = vpack.c.bf16 %v522, %v521
        %v538 = vpack.c.bf16 %v524, %v523
        %v539 = vpack.c.bf16 %v526, %v525
        %v540 = vpack.c.bf16 %v528, %v527
        %v541 = vpack.c.bf16 %v530, %v529
        %v542 = vpack.c.bf16 %v532, %v531
        %v543 = vpack.c.bf16 %v534, %v533
        %v544 = vpack.c.bf16 %v536, %v535
        %v545 = vld [vmem:[#allocation8] sm:$0xf]
        %v546 = vld [vmem:[#allocation8 + $0x4] sm:$0xf]
        %v547 = vld [vmem:[#allocation8 + $0x8] sm:$0xf]
        %v548 = vld [vmem:[#allocation8 + $0xc] sm:$0xf]
        %v549 = vld [vmem:[#allocation8 + $0x10] sm:$0xf]
        %v550 = vld [vmem:[#allocation8 + $0x14] sm:$0xf]
        %v551 = vld [vmem:[#allocation8 + $0x18] sm:$0xf]
        %v552 = vld [vmem:[#allocation8 + $0x1c] sm:$0xf]
        %v553 = vld [vmem:[#allocation8 + $0x20] sm:$0xf]
        %v554 = vld [vmem:[#allocation8 + $0x24] sm:$0xf]
        %v555 = vld [vmem:[#allocation8 + $0x28] sm:$0xf]
        %v556 = vld [vmem:[#allocation8 + $0x2c] sm:$0xf]
        %v557 = vld [vmem:[#allocation8 + $0x30] sm:$0xf]
        %v558 = vld [vmem:[#allocation8 + $0x34] sm:$0xf]
        %v559 = vld [vmem:[#allocation8 + $0x38] sm:$0xf]
        %v560 = vld [vmem:[#allocation8 + $0x3c] sm:$0xf]
        %v561 = vld [vmem:[%s4] sm:$0x1]
        %v563 = vlaneseq
        %v564 = vshrl.u32 %v563, 7
        %v565 = vsub.s32 0, %v564
        %v566 = vrot.slane %v561, %v565
        %v584 = vunpack.c.l.b16 %v545
        %v585 = vunpack.c.l.b16 %v546
        %v586 = vunpack.c.l.b16 %v547
        %v587 = vunpack.c.l.b16 %v548
        %v588 = vunpack.c.l.b16 %v549
        %v589 = vunpack.c.l.b16 %v550
        %v590 = vunpack.c.l.b16 %v551
        %v591 = vunpack.c.l.b16 %v552
        %v592 = vunpack.c.l.b16 %v553
        %v593 = vunpack.c.l.b16 %v554
        %v594 = vunpack.c.l.b16 %v555
        %v595 = vunpack.c.l.b16 %v556
        %v596 = vunpack.c.l.b16 %v557
        %v597 = vunpack.c.l.b16 %v558
        %v598 = vunpack.c.l.b16 %v559
        %v599 = vunpack.c.l.b16 %v560
        %v600 = vpack.c.b16 %v585, %v584
        %v601 = vpack.c.b16 %v587, %v586
        %v602 = vpack.c.b16 %v589, %v588
        %v603 = vpack.c.b16 %v591, %v590
        %v604 = vpack.c.b16 %v593, %v592
        %v605 = vpack.c.b16 %v595, %v594
        %v606 = vpack.c.b16 %v597, %v596
        %v607 = vpack.c.b16 %v599, %v598
        %616 = vmatprep.subr.bf16.mxu0 0
        %617 = vmatpush1.bf16.msra.mxu0 %v607
        %618 = vmatprep.subr.bf16.mxu0 0
        %619 = vmatpush1.bf16.msra.mxu0 %v606
        %620 = vmatprep.subr.bf16.mxu0 0
        %621 = vmatpush1.bf16.msra.mxu0 %v605
        %622 = vmatprep.subr.bf16.mxu0 0
        %623 = vmatpush1.bf16.msra.mxu0 %v604
        %624 = vmatprep.subr.bf16.mxu0 0
        %625 = vmatpush1.bf16.msra.mxu0 %v603
        %626 = vmatprep.subr.bf16.mxu0 0
        %627 = vmatpush1.bf16.msra.mxu0 %v602
        %628 = vmatprep.subr.bf16.mxu0 0
        %629 = vmatpush1.bf16.msra.mxu0 %v601
        %630 = vmatprep.subr.bf16.mxu0 0
        %631 = vmatpush1.bf16.msra.mxu0 %v600
        %632 = vmatprep.subr.bf16.mxu0 0
        %633 = vmatpush2.bf16.msra.mxu0 0
        %634 = vmatprep.subr.bf16.mxu0 0
        %635 = vmatpush2.bf16.msra.mxu0 0
        %636 = vmatprep.subr.bf16.mxu0 0
        %637 = vmatpush2.bf16.msra.mxu0 0
        %638 = vmatprep.subr.bf16.mxu0 0
        %639 = vmatpush2.bf16.msra.mxu0 0
        %640 = vmatprep.subr.bf16.mxu0 0
        %641 = vmatpush2.bf16.msra.mxu0 0
        %642 = vmatprep.subr.bf16.mxu0 0
        %643 = vmatpush2.bf16.msra.mxu0 0
        %644 = vmatprep.subr.bf16.mxu0 0
        %645 = vmatpush2.bf16.msra.mxu0 0
        %646 = vmatprep.subr.bf16.mxu0 0
        %647 = vmatpush2.bf16.msra.mxu0 0
        %648 = vmatprep.mubr.bf16.mxu0 0
        %649 = vmatmul.mubr.bf16.gmra.mxu0 %v537
        %v650 = vpop.f32.mrf.mxu0
        %v651 = vadd.f32 %v566, %v650
        %v652 = vpop.f32.mrf.mxu0
        %v653 = vpop.f32.mrf.mxu0
        %v654 = vadd.f32 %v566, %v653
        %v655 = vpop.f32.mrf.mxu0
        %656 = vmatprep.mubr.bf16.mxu0 0
        %657 = vmatmul.mubr.bf16.gmra.mxu0 %v538
        %v658 = vpop.f32.mrf.mxu0
        %v659 = vadd.f32 %v566, %v658
        %v660 = vpop.f32.mrf.mxu0
        %v661 = vpop.f32.mrf.mxu0
        %v662 = vadd.f32 %v566, %v661
        %v663 = vpop.f32.mrf.mxu0
        %664 = vmatprep.mubr.bf16.mxu0 0
        %665 = vmatmul.mubr.bf16.gmra.mxu0 %v539
        %v666 = vpop.f32.mrf.mxu0
        %v667 = vadd.f32 %v566, %v666
        %v668 = vpop.f32.mrf.mxu0
        %v669 = vpop.f32.mrf.mxu0
        %v670 = vadd.f32 %v566, %v669
        %v671 = vpop.f32.mrf.mxu0
        %672 = vmatprep.mubr.bf16.mxu0 0
        %673 = vmatmul.mubr.bf16.gmra.mxu0 %v540
        %v674 = vpop.f32.mrf.mxu0
        %v675 = vadd.f32 %v566, %v674
        %v676 = vpop.f32.mrf.mxu0
        %v677 = vpop.f32.mrf.mxu0
        %v678 = vadd.f32 %v566, %v677
        %v679 = vpop.f32.mrf.mxu0
        %680 = vmatprep.mubr.bf16.mxu0 0
        %681 = vmatmul.mubr.bf16.gmra.mxu0 %v541
        %v682 = vpop.f32.mrf.mxu0
        %v683 = vadd.f32 %v566, %v682
        %v684 = vpop.f32.mrf.mxu0
        %v685 = vpop.f32.mrf.mxu0
        %v686 = vadd.f32 %v566, %v685
        %v687 = vpop.f32.mrf.mxu0
        %688 = vmatprep.mubr.bf16.mxu0 0
        %689 = vmatmul.mubr.bf16.gmra.mxu0 %v542
        %v690 = vpop.f32.mrf.mxu0
        %v691 = vadd.f32 %v566, %v690
        %v692 = vpop.f32.mrf.mxu0
        %v693 = vpop.f32.mrf.mxu0
        %v694 = vadd.f32 %v566, %v693
        %v695 = vpop.f32.mrf.mxu0
        %696 = vmatprep.mubr.bf16.mxu0 0
        %697 = vmatmul.mubr.bf16.gmra.mxu0 %v543
        %v698 = vpop.f32.mrf.mxu0
        %v699 = vadd.f32 %v566, %v698
        %v700 = vpop.f32.mrf.mxu0
        %v701 = vpop.f32.mrf.mxu0
        %v702 = vadd.f32 %v566, %v701
        %v703 = vpop.f32.mrf.mxu0
        %704 = vmatprep.mubr.bf16.mxu0 0
        %705 = vmatmul.mubr.bf16.gmra.mxu0 %v544
        %v706 = vpop.f32.mrf.mxu0
        %v707 = vadd.f32 %v566, %v706
        %v708 = vpop.f32.mrf.mxu0
        %v709 = vpop.f32.mrf.mxu0
        %v710 = vadd.f32 %v566, %v709
        %v711 = vpop.f32.mrf.mxu0
        %712 = vdwg.mxu0
        %v713 = vmax.f32 %v651, 0.0
        %v714 = vmax.f32 %v654, 0.0
        %v715 = vmax.f32 %v659, 0.0
        %v716 = vmax.f32 %v662, 0.0
        %v717 = vmax.f32 %v667, 0.0
        %v718 = vmax.f32 %v670, 0.0
        %v719 = vmax.f32 %v675, 0.0
        %v720 = vmax.f32 %v678, 0.0
        %v721 = vmax.f32 %v683, 0.0
        %v722 = vmax.f32 %v686, 0.0
        %v723 = vmax.f32 %v691, 0.0
        %v724 = vmax.f32 %v694, 0.0
        %v725 = vmax.f32 %v699, 0.0
        %v726 = vmax.f32 %v702, 0.0
        %v727 = vmax.f32 %v707, 0.0
        %v728 = vmax.f32 %v710, 0.0
        %v729 = vld [vmem:[%s5] sm:$0xf]
        %v730 = vpack.c.bf16 %v714, %v713
        %v731 = vpack.c.bf16 %v716, %v715
        %v732 = vpack.c.bf16 %v718, %v717
        %v733 = vpack.c.bf16 %v720, %v719
        %v734 = vpack.c.bf16 %v722, %v721
        %v735 = vpack.c.bf16 %v724, %v723
        %v736 = vpack.c.bf16 %v726, %v725
        %v737 = vpack.c.bf16 %v728, %v727
        %s738 = sld [smem:[#allocation2]]
        %v739 = vstv %s738
        %740 = vmatprep.subr.bf16.mxu0 0
        %741 = vmatpush1.bf16.xpose.msra.mxu0 %v737
        %742 = vmatprep.subr.bf16.mxu0 0
        %743 = vmatpush1.bf16.xpose.msra.mxu0 %v736
        %744 = vmatprep.subr.bf16.mxu0 0
        %745 = vmatpush1.bf16.xpose.msra.mxu0 %v735
        %746 = vmatprep.subr.bf16.mxu0 0
        %747 = vmatpush1.bf16.xpose.msra.mxu0 %v734
        %748 = vmatprep.subr.bf16.mxu0 0
        %749 = vmatpush1.bf16.xpose.msra.mxu0 %v733
        %750 = vmatprep.subr.bf16.mxu0 0
        %751 = vmatpush1.bf16.xpose.msra.mxu0 %v732
        %752 = vmatprep.subr.bf16.mxu0 0
        %753 = vmatpush1.bf16.xpose.msra.mxu0 %v731
        %754 = vmatprep.subr.bf16.mxu0 0
        %755 = vmatpush1.bf16.xpose.msra.mxu0 %v730
        %756 = vmatprep.subr.bf16.mxu0 0
        %757 = vmatpush2.bf16.xpose.msra.mxu0 0
        %758 = vmatprep.subr.bf16.mxu0 0
        %759 = vmatpush2.bf16.xpose.msra.mxu0 0
        %760 = vmatprep.subr.bf16.mxu0 0
        %761 = vmatpush2.bf16.xpose.msra.mxu0 0
        %762 = vmatprep.subr.bf16.mxu0 0
        %763 = vmatpush2.bf16.xpose.msra.mxu0 0
        %764 = vmatprep.subr.bf16.mxu0 0
        %765 = vmatpush2.bf16.xpose.msra.mxu0 0
        %766 = vmatprep.subr.bf16.mxu0 0
        %767 = vmatpush2.bf16.xpose.msra.mxu0 0
        %768 = vmatprep.subr.bf16.mxu0 0
        %769 = vmatpush2.bf16.xpose.msra.mxu0 0
        %770 = vmatprep.subr.bf16.mxu0 0
        %771 = vmatpush2.bf16.xpose.msra.mxu0 0
        %772 = vmatprep.mubr.bf16.mxu0 0
        %773 = vmatmul.mubr.bf16.gmra.mxu0 %v729
        %v774 = vpop.f32.mrf.mxu0
        %v775 = vadd.f32 %v739, %v774
        %v776 = vpop.f32.mrf.mxu0
        %v777 = vpop.f32.mrf.mxu0
        %v778 = vpop.f32.mrf.mxu0
        %779 = vdwg.mxu0
        %780 = vst [vmem:[%s326] sm:$0xff] %v775
        %s781 = sand.u32 %s186, 1
        %s782 = scalar_lea.sflag [#allocation5], %s781
        %s783 = sand.u32 %s186, 1
        %s784 = smul.addr %s783, 8
        %s785 = scalar_lea.vmem [#allocation9], %s784
        // Predicated region
        $region61: #{tpu_custom_call.1} parent=47 // pred_check
          %p786 = pneg %p196
        $region62: #{tpu_custom_call.1} parent=47 // pred_check_branch
          %788 = sbr.rel (%p786) target = $region64
        $region63: #{tpu_custom_call.1} parent=47 // pred_region
          %s790 = ssub.s32 128, 128
          %791 = vsyncadd %s782, %s790
          %s792 = smul.addr %s26, 128
          %s793 = scalar_lea.hbm %s7, %s792
          %s795 = sshll.u32 %s785, 4
          %s796 = int_to_ptr.vmem [resolvable:$true] %s795
          %798 = dma.vmem_to_hbm [thread:$0]  %s796, 128, %s793, %s782
        $region64: #{tpu_custom_call.1} parent=47 // pred_fallthru
          _
      $region48: #{tpu_custom_call.1} parent=5 // pred_fallthru
        _
      %p799 = scmp.le.s32.totalorder 2, %s21
      // Predicated region
      $region65: #{tpu_custom_call.1} parent=5 // pred_check
        %p800 = pneg %p799
      $region66: #{tpu_custom_call.1} parent=5 // pred_check_branch
        %802 = sbr.rel (%p800) target = $region68
      $region67: #{tpu_custom_call.1} parent=5 // pred_region
        %s803 = ssub.s32 %s21, 2
        // Predicated region
        $region69: #{tpu_custom_call.1} parent=67 // pred_check
          %p804 = pneg %p202
        $region70: #{tpu_custom_call.1} parent=67 // pred_check_branch
          %806 = sbr.rel (%p804) target = $region72
        $region71: #{tpu_custom_call.1} parent=67 // pred_region
          %s807 = sand.u32 %s187, 1
          %s808 = scalar_lea.sflag [#allocation5], %s807
          %s809 = sand.u32 %s187, 1
          %s810 = smul.addr %s809, 8
          %s811 = scalar_lea.vmem [#allocation9], %s810
          %812 = dma.done %s808, 128
        $region72: #{tpu_custom_call.1} parent=67 // pred_fallthru
          _
      $region68: #{tpu_custom_call.1} parent=5 // pred_fallthru
        _
    $region6: #{tpu_custom_call.1} parent=1 // loop_footer
      %s25 = sadd.s32 1, %s21
    $region7: #{tpu_custom_call.1} parent=1 // loop_footer_branch
      %20 = sbr.rel target = $region3
    $region8: #{tpu_custom_call.1} parent=1 // loop_exit
      _
    %813 = vsyncpa [#allocation4], 1
    %s814 = scalar_lea.sflag [#allocation4], 1
    %815 = vsyncpa %s814, 1
    %816 = vsyncpa [#allocation7], 1
    %817 = vsyncpa [#allocation5], 1
    %s818 = scalar_lea.sflag [#allocation5], 1
    %819 = vsyncpa %s818, 1

</llo_original>
